<compile_context>
chip_gen: v5e
topology: v5e:2x2
jax: 0.10.0
libtpu: 0.0.40
codegen_flags: <defaults>
</compile_context>

<pallas_src>
import functools

import jax
import jax.numpy as jnp
from jax.experimental import pallas as pl
from jax.experimental.pallas import tpu as pltpu


def _round_up(x, m):
    return ((x + m - 1) // m) * m


# --------------------- Kernel 1: LayerNorm + ReLU (lane-dense, bf16 out) ---------------------
def _ln_relu_kernel(x_ref, gamma_ref, beta_ref, o_ref, *, c_real):
    x = x_ref[...].astype(jnp.float32)                           # [tile, c_pad]
    inv_c = 1.0 / c_real
    # x is zero-padded past c_real on the lane axis -> mean needs no mask.
    mu = jnp.sum(x, axis=-1, keepdims=True) * inv_c
    # Two-pass variance; mask padded columns (they would contribute mu^2 otherwise).
    col = jax.lax.broadcasted_iota(jnp.int32, x.shape, 1)
    diff = jnp.where(col < c_real, x - mu, 0.0)
    var = jnp.sum(diff * diff, axis=-1, keepdims=True) * inv_c
    xn = diff * jax.lax.rsqrt(var + 1e-5)
    h = xn * gamma_ref[...] + beta_ref[...]                      # padded gamma/beta = 0 -> 0
    o_ref[...] = jnp.maximum(h, 0.0).astype(o_ref.dtype)


def layernorm_relu(x_pad, gamma_pad, beta_pad, c_real, *, tile):
    n_pad, c_pad = x_pad.shape
    gamma2 = gamma_pad.reshape(1, c_pad).astype(jnp.float32)
    beta2 = beta_pad.reshape(1, c_pad).astype(jnp.float32)
    kern = functools.partial(_ln_relu_kernel, c_real=c_real)
    return pl.pallas_call(
        kern,
        out_shape=jax.ShapeDtypeStruct((n_pad, c_pad), jnp.bfloat16),
        grid_spec=pltpu.PrefetchScalarGridSpec(
            num_scalar_prefetch=0,
            grid=(n_pad // tile,),
            in_specs=[
                pl.BlockSpec((tile, c_pad), lambda i: (i, 0)),
                pl.BlockSpec((1, c_pad), lambda i: (0, 0)),
                pl.BlockSpec((1, c_pad), lambda i: (0, 0)),
            ],
            out_specs=pl.BlockSpec((tile, c_pad), lambda i: (i, 0)),
        ),
        compiler_params=pltpu.CompilerParams(dimension_semantics=("parallel",)),
    )(x_pad, gamma2, beta2)


# --------------------- Kernel 2: SAGEConv ---------------------
# out[i] = (mean_{j in N(i)} h[j]) @ Wl + h[i] @ Wr + b
#        = ((A01 @ h)[i] * (1/deg[i])) @ Wl + h[i] @ Wr + b
def _sage_kernel(a_ref, h_ref, hroot_ref, wl_ref, wr_ref, b_ref, dinv_ref,
                 o_ref, acc_ref, *, resident_h, tk):
    k = pl.program_id(1)

    @pl.when(k == 0)
    def _():
        acc_ref[...] = jnp.zeros_like(acc_ref)

    if resident_h:
        # h is fully resident in VMEM; slice the k-tile ourselves (tile-aligned).
        start = pl.multiple_of(k * tk, tk)
        h_k = h_ref[pl.ds(start, tk), :]
    else:
        h_k = h_ref[...]

    # Partial neighbor sum over the k-th node slice (bf16 x bf16 -> fp32 accumulate).
    acc_ref[...] += jnp.dot(a_ref[...], h_k, preferred_element_type=jnp.float32)

    @pl.when(k == pl.num_programs(1) - 1)
    def _():
        # fp32 mean scaling (exact 1/deg), then two fused MXU calls (no concat temp).
        agg = (acc_ref[...] * dinv_ref[...]).astype(jnp.bfloat16)       # [tn, c_pad]
        out = jnp.dot(agg, wl_ref[...], preferred_element_type=jnp.float32)
        out = out + jnp.dot(hroot_ref[...], wr_ref[...],
                            preferred_element_type=jnp.float32)
        out = out + b_ref[...]
        o_ref[...] = out.astype(o_ref.dtype)


def sage_conv(a01, h, wl, wr, bias2, deg_inv, *, tn, tk, n_i_pad, n_k_pad,
              resident_h, vmem_limit_bytes):
    c_pad = h.shape[1]
    f_pad = wl.shape[1]
    n_h_rows = h.shape[0]

    if resident_h:
        # Full-extent block, constant index map -> DMA'd once, resident across the grid.
        h_spec = pl.BlockSpec((n_h_rows, c_pad), lambda i, k: (0, 0))
    else:
        h_spec = pl.BlockSpec((tk, c_pad), lambda i, k: (k, 0))

    kern = functools.partial(_sage_kernel, resident_h=resident_h, tk=tk)
    return pl.pallas_call(
        kern,
        out_shape=jax.ShapeDtypeStruct((n_i_pad, f_pad), jnp.float32),
        grid_spec=pltpu.PrefetchScalarGridSpec(
            num_scalar_prefetch=0,
            grid=(n_i_pad // tn, n_k_pad // tk),
            in_specs=[
                pl.BlockSpec((tn, tk), lambda i, k: (i, k)),        # 0/1 adjacency tile
                h_spec,                                             # neighbor features
                pl.BlockSpec((tn, c_pad), lambda i, k: (i, 0)),     # root block (const over k)
                pl.BlockSpec((c_pad, f_pad), lambda i, k: (0, 0)),  # Wl
                pl.BlockSpec((c_pad, f_pad), lambda i, k: (0, 0)),  # Wr
                pl.BlockSpec((1, f_pad), lambda i, k: (0, 0)),      # bias
                pl.BlockSpec((tn, 1), lambda i, k: (i, 0)),         # 1/deg (fp32)
            ],
            out_specs=pl.BlockSpec((tn, f_pad), lambda i, k: (i, 0)),
            scratch_shapes=[pltpu.VMEM((tn, c_pad), jnp.float32)],
        ),
        compiler_params=pltpu.CompilerParams(
            dimension_semantics=("parallel", "arbitrary"),
            vmem_limit_bytes=vmem_limit_bytes),
    )(a01, h, h, wl, wr, bias2, deg_inv)


# ----------------------------- Tiling / padding plan -----------------------------
def _plan(n, c, f_out, *, tn_max=512, tk_max=2048, ln_tile_max=1024,
          resident_budget=14 << 20):
    c_pad = _round_up(c, 128)
    f_pad = _round_up(f_out, 128)

    # Node-row (i) tiling: rows padded only to a multiple of tn (16 covers bf16 tiling).
    tn = max(16, min(_round_up(tn_max, 16), _round_up(n, 16)))
    n_i_pad = _round_up(n, tn)

    # Contraction (k) tiling: tk chosen adaptively so column padding stays small.
    if n <= 128:
        tk = _round_up(n, 16)
        num_k = 1
    else:
        num_k = -(-n // tk_max)                 # ceil(n / tk_max)
        tk = _round_up(-(-n // num_k), 128)
        num_k = -(-n // tk)
    n_k_pad = num_k * tk

    # LayerNorm tile decoupled from tn; h rows padded to a multiple of it.
    base = max(n_i_pad, n_k_pad)
    if base <= ln_tile_max:
        ln_tile = base
        n_h_pad = base
    else:
        ln_tile = _round_up(ln_tile_max, 16)
        n_h_pad = _round_up(base, ln_tile)

    # Keep all of h resident in VMEM when it fits (x2 for default double-buffering).
    resident_h = (2 * n_h_pad * c_pad * 2) <= resident_budget

    # VMEM estimate -> vmem_limit_bytes (keeps headroom below v7x's 64 MiB physical).
    est = 2 * tn * tk * 2                                             # A tiles (bf16)
    est += (2 * n_h_pad * c_pad * 2) if resident_h else (2 * tk * c_pad * 2)
    est += 2 * tn * c_pad * 2                                         # root tiles
    est += 2 * 2 * c_pad * f_pad * 2                                  # Wl, Wr
    est += 2 * 8 * f_pad * 4                                          # bias (padded)
    est += 2 * tn * 128 * 4                                           # 1/deg (lane-padded)
    est += 2 * tn * f_pad * 4                                         # output tiles
    est += tn * c_pad * 4                                             # fp32 accumulator
    vmem_limit = int(min(56 << 20, max(32 << 20, est + (4 << 20))))

    return dict(c_pad=c_pad, f_pad=f_pad, tn=tn, tk=tk, n_i_pad=n_i_pad,
                n_k_pad=n_k_pad, ln_tile=ln_tile, n_h_pad=n_h_pad,
                resident_h=resident_h, vmem_limit=vmem_limit)


# ----------------------------- GNNBlock wrapper -----------------------------
def gnn_block_forward(params, x, edge_index, *, tn=512, tk=2048, ln_tile=1024):
    """x: [N, C] node features; edge_index: [2, E] int32 (row 0 = src, row 1 = dst)."""
    n, c = x.shape
    f_out = params["wl_t"].shape[1]
    p = _plan(n, c, f_out, tn_max=tn, tk_max=tk, ln_tile_max=ln_tile)
    c_pad, f_pad = p["c_pad"], p["f_pad"]

    src, dst = edge_index[0], edge_index[1]
    # Exact 0/1 adjacency built directly at padded shape (no separate normalize/pad/cast
    # N^2 passes); mean normalization happens in fp32 inside the kernel epilogue.
    # TODO(synk): CSR + scalar-prefetch segment-mean kernel (O(E*C)) for large graphs.
    a01 = jnp.zeros((p["n_i_pad"], p["n_k_pad"]), jnp.bfloat16).at[dst, src].add(1.0)
    deg = jnp.zeros((p["n_i_pad"],), jnp.float32).at[dst].add(1.0)        # O(E)
    deg_inv = (1.0 / jnp.maximum(deg, 1.0)).reshape(p["n_i_pad"], 1)      # fp32

    x_p = jnp.pad(x.astype(jnp.float32), ((0, p["n_h_pad"] - n), (0, c_pad - c)))
    gamma_p = jnp.pad(params["gamma"].astype(jnp.float32), (0, c_pad - c))
    beta_p = jnp.pad(params["beta"].astype(jnp.float32), (0, c_pad - c))

    h = layernorm_relu(x_p, gamma_p, beta_p, c, tile=p["ln_tile"])        # bf16
    # dropout: eval mode -> identity.

    wl = jnp.pad(params["wl_t"].astype(jnp.float32),
                 ((0, c_pad - c), (0, f_pad - f_out))).astype(jnp.bfloat16)
    wr = jnp.pad(params["wr_t"].astype(jnp.float32),
                 ((0, c_pad - c), (0, f_pad - f_out))).astype(jnp.bfloat16)
    bias2 = jnp.pad(params["bias"].astype(jnp.float32),
                    (0, f_pad - f_out)).reshape(1, f_pad)

    out = sage_conv(a01, h, wl, wr, bias2, deg_inv,
                    tn=p["tn"], tk=p["tk"], n_i_pad=p["n_i_pad"],
                    n_k_pad=p["n_k_pad"], resident_h=p["resident_h"],
                    vmem_limit_bytes=p["vmem_limit"])
    return out[:n, :f_out]


# ----------------------------- Reference (pure JAX, fp32) -----------------------------
def gnn_block_reference(params, x, edge_index):
    n, _ = x.shape
    mu = jnp.mean(x, axis=-1, keepdims=True)
    var = jnp.mean((x - mu) ** 2, axis=-1, keepdims=True)
    h = (x - mu) / jnp.sqrt(var + 1e-5) * params["gamma"] + params["beta"]
    h = jnp.maximum(h, 0.0)
    src, dst = edge_index[0], edge_index[1]
    a = jnp.zeros((n, n), jnp.float32).at[dst, src].add(1.0)
    deg = jnp.sum(a, axis=1, keepdims=True)
    agg = (a / jnp.maximum(deg, 1.0)) @ h
    return agg @ params["wl_t"] + h @ params["wr_t"] + params["bias"]


if __name__ == "__main__":
    N, C, F_out, E = 64, 32, 64, 256
    key = jax.random.PRNGKey(0)
    k1, k2, k3, k4, k5, k6, k7, k8 = jax.random.split(key, 8)

    x = jax.random.normal(k1, (N, C), jnp.float32)
    edge_index = jnp.stack(
        [
            jax.random.randint(k2, (E,), 0, N, jnp.int32),
            jax.random.randint(k3, (E,), 0, N, jnp.int32),
        ],
        axis=0,
    )

    params = {
        # LayerNorm affine params (deterministic, slightly perturbed from 1/0)
        "gamma": 1.0 + 0.1 * jax.random.normal(k4, (C,), jnp.float32),
        "beta": 0.1 * jax.random.normal(k5, (C,), jnp.float32),
        # SAGEConv: lin_l (neighbors, with bias) and lin_r (root, no bias),
        # stored transposed as [C, F_out].
        "wl_t": jax.random.normal(k6, (C, F_out), jnp.float32) / jnp.sqrt(C),
        "wr_t": jax.random.normal(k7, (C, F_out), jnp.float32) / jnp.sqrt(C),
        "bias": 0.1 * jax.random.normal(k8, (F_out,), jnp.float32),
    }

    out = gnn_block_forward(params, x, edge_index)
    out = jax.block_until_ready(out)

    ref = gnn_block_reference(params, x, edge_index)
    assert out.shape == (N, F_out)
    # bf16 MXU inputs (h, adjacency, weights) with fp32 accumulation & fp32 1/deg.
    assert jnp.allclose(out, ref, atol=7.5e-2, rtol=7.5e-2), "mismatch vs reference"

    print("KERNEL_OK")
</pallas_src>

<mosaic_0001>
module attributes {stable_mosaic.version = 11 : i64} {
  func.func @_ln_relu_kernel(%arg0: i32, %arg1: memref<64x128xf32, #tpu.memory_space<vmem>>, %arg2: memref<1x128xf32, #tpu.memory_space<vmem>>, %arg3: memref<1x128xf32, #tpu.memory_space<vmem>>, %arg4: memref<64x128xbf16, #tpu.memory_space<vmem>>) attributes {dimension_semantics = [#tpu.dimension_semantics<parallel>], iteration_bounds = array<i64: 1>, scalar_prefetch = 0 : i64, scratch_operands = 0 : i64, tpu.core_type = #tpu.core_type<tc>, window_params = [{transform_indices = @transform_0, window_bounds = array<i64: 64, 128>}, {pipeline_mode = #tpu.pipeline_mode<synchronous>, transform_indices = @transform_1, window_bounds = array<i64: 1, 128>}, {pipeline_mode = #tpu.pipeline_mode<synchronous>, transform_indices = @transform_2, window_bounds = array<i64: 1, 128>}, {transform_indices = @transform_3, window_bounds = array<i64: 64, 128>}]} {
    %c0 = arith.constant 0 : index
    %c0_0 = arith.constant 0 : index
    %0 = vector.load %arg1[%c0, %c0_0] : memref<64x128xf32, #tpu.memory_space<vmem>>, vector<64x128xf32>
    %cst = arith.constant dense<0.000000e+00> : vector<64xf32>
    %1 = vector.multi_reduction <add>, %0, %cst [1] : vector<64x128xf32> to vector<64xf32>
    %2 = vector.shape_cast %1 : vector<64xf32> to vector<64x1xf32>
    %cst_1 = arith.constant 3.125000e-02 : f32
    %3 = vector.broadcast %cst_1 : f32 to vector<64x1xf32>
    %4 = arith.mulf %2, %3 : vector<64x1xf32>
    %5 = tpu.iota {dimensions = array<i32: 1>} : vector<64x128xi32>
    %c32_i32 = arith.constant 32 : i32
    %6 = vector.broadcast %c32_i32 : i32 to vector<64x128xi32>
    %7 = arith.cmpi slt, %5, %6 : vector<64x128xi32>
    %8 = vector.broadcast %4 : vector<64x1xf32> to vector<64x128xf32>
    %9 = arith.subf %0, %8 : vector<64x128xf32>
    %cst_2 = arith.constant 0.000000e+00 : f32
    %10 = vector.broadcast %cst_2 : f32 to vector<64x128xf32>
    %11 = arith.select %7, %9, %10 : vector<64x128xi1>, vector<64x128xf32>
    %12 = arith.mulf %11, %11 : vector<64x128xf32>
    %cst_3 = arith.constant dense<0.000000e+00> : vector<64xf32>
    %13 = vector.multi_reduction <add>, %12, %cst_3 [1] : vector<64x128xf32> to vector<64xf32>
    %14 = vector.shape_cast %13 : vector<64xf32> to vector<64x1xf32>
    %cst_4 = arith.constant 3.125000e-02 : f32
    %15 = vector.broadcast %cst_4 : f32 to vector<64x1xf32>
    %16 = arith.mulf %14, %15 : vector<64x1xf32>
    %cst_5 = arith.constant 9.99999974E-6 : f32
    %17 = vector.broadcast %cst_5 : f32 to vector<64x1xf32>
    %18 = arith.addf %16, %17 : vector<64x1xf32>
    %19 = math.rsqrt %18 : vector<64x1xf32>
    %20 = vector.broadcast %19 : vector<64x1xf32> to vector<64x128xf32>
    %21 = arith.mulf %11, %20 : vector<64x128xf32>
    %c0_6 = arith.constant 0 : index
    %c0_7 = arith.constant 0 : index
    %22 = vector.load %arg2[%c0_6, %c0_7] : memref<1x128xf32, #tpu.memory_space<vmem>>, vector<1x128xf32>
    %23 = vector.broadcast %22 : vector<1x128xf32> to vector<64x128xf32>
    %24 = arith.mulf %21, %23 : vector<64x128xf32>
    %c0_8 = arith.constant 0 : index
    %c0_9 = arith.constant 0 : index
    %25 = vector.load %arg3[%c0_8, %c0_9] : memref<1x128xf32, #tpu.memory_space<vmem>>, vector<1x128xf32>
    %26 = vector.broadcast %25 : vector<1x128xf32> to vector<64x128xf32>
    %27 = arith.addf %24, %26 : vector<64x128xf32>
    %cst_10 = arith.constant 0.000000e+00 : f32
    %28 = vector.broadcast %cst_10 : f32 to vector<64x128xf32>
    %29 = arith.maximumf %27, %28 : vector<64x128xf32>
    %30 = arith.truncf %29 : vector<64x128xf32> to vector<64x128xbf16>
    %c0_11 = arith.constant 0 : index
    %c0_12 = arith.constant 0 : index
    %31 = vector.load %arg4[%c0_11, %c0_12] : memref<64x128xbf16, #tpu.memory_space<vmem>>, vector<64x128xbf16>
    tpu.vector_store %arg4[%c0_11, %c0_12], %30 {strides = array<i32>} : memref<64x128xbf16, #tpu.memory_space<vmem>>, vector<64x128xbf16>,
    return
  }
  func.func @transform_0(%arg0: i32) -> (i32, i32) {
    %c0_i32 = arith.constant 0 : i32
    %c0_i32_0 = arith.constant 0 : i32
    return %arg0, %c0_i32 : i32, i32
  }
  func.func @transform_1(%arg0: i32) -> (i32, i32) {
    %c0_i32 = arith.constant 0 : i32
    %c0_i32_0 = arith.constant 0 : i32
    %c0_i32_1 = arith.constant 0 : i32
    return %c0_i32, %c0_i32_0 : i32, i32
  }
  func.func @transform_2(%arg0: i32) -> (i32, i32) {
    %c0_i32 = arith.constant 0 : i32
    %c0_i32_0 = arith.constant 0 : i32
    %c0_i32_1 = arith.constant 0 : i32
    return %c0_i32, %c0_i32_0 : i32, i32
  }
  func.func @transform_3(%arg0: i32) -> (i32, i32) {
    %c0_i32 = arith.constant 0 : i32
    %c0_i32_0 = arith.constant 0 : i32
    return %arg0, %c0_i32 : i32, i32
  }
}

</mosaic_0001>

<llo_original>
// kernel: tpu_custom_call.1
$region0: #{tpu_custom_call.1}
  #allocation0 [shape = 'u32[]', space=smem, size = 0x4, offset = 0x4, fixed_abs, tag = 'smem constant byte address 0x4 - core index']
  #allocation1 [shape = 'u32[72,128]{1,0:T(1,128)}', space=vmem, size = 0x9000, scoped, tag = 'internal scratch']
  %s0 = inlined_call_operand.hbm [shape: f32[64,128], index: 0, kind: input, shape index: {}]
  %s1 = inlined_call_operand.hbm [shape: f32[1,128], index: 1, kind: input, shape index: {}]
  %s2 = inlined_call_operand.vmem [shape: f32[1,128], index: 2, kind: input, shape index: {}]
  %s3 = inlined_call_operand.hbm [shape: bf16[64,128], index: 3, kind: output, shape index: {}]
  %s4 = sld [smem:[#allocation0]]
  $region30: #{tpu_custom_call.1} parent=0
    _
  %s6 = ssub.s32 1, %s4
  %s7 = scalar_select 0, %s6, %s4
  $region1: #{tpu_custom_call.1} parent=0
    #allocation2 [shape = 'u8[32768]{0}', space=vmem, size = 0x8000, scoped, tag = 'input window, operand 0, single buffered']
    #allocation3 [shape = 's32[1]{0}', space=sflag, size = 0x4, scoped, tag = 'scoped memory for tpu_custom_call.1']
    #allocation4 [shape = 's32[1]{0}', space=sflag, size = 0x4, scoped, tag = 'scoped memory for tpu_custom_call.1']
    #allocation5 [shape = 'u8[512]{0}', space=vmem, size = 0x400, scoped, tag = 'input window, operand 1, single buffered']
    #allocation6 [shape = 's32[1]{0}', space=sflag, size = 0x4, scoped, tag = 'scoped memory for tpu_custom_call.1']
    #allocation7 [shape = 'u8[16384]{0}', space=vmem, size = 0x4000, scoped, tag = 'output window, operand 0, single buffered']
    %8 = vsyncpa [#allocation3], 0
    %9 = vsyncpa [#allocation6], 0
    %10 = vsyncpa [#allocation4], 0
    // Predicated region
    $region2: #{tpu_custom_call.1} parent=1 // pred_check
      _
    $region3: #{tpu_custom_call.1} parent=1 // pred_check_branch
      %12 = sbr.rel (0) target = $region5
    $region4: #{tpu_custom_call.1} parent=1 // pred_region
      %14 = vsyncadd [#allocation3], 0
      %s15 = sshll.u32 %s0, 4
      %s16 = int_to_ptr.hbm [resolvable:$true] %s15
      %s17 = sshll.u32 [#allocation2], 4
      %s18 = int_to_ptr.vmem [resolvable:$true] %s17
      %23 = dma.hbm_to_vmem [thread:$0]  %s16, 1024, %s18, [#allocation3], 128, 128, 8
    $region5: #{tpu_custom_call.1} parent=1 // pred_fallthru
      _
    // Predicated region
    $region6: #{tpu_custom_call.1} parent=1 // pred_check
      _
    $region7: #{tpu_custom_call.1} parent=1 // pred_check_branch
      %25 = sbr.rel (0) target = $region9
    $region8: #{tpu_custom_call.1} parent=1 // pred_region
      %27 = vsyncadd [#allocation6], 0
      %s29 = sshll.u32 %s1, 4
      %s30 = int_to_ptr.hbm [resolvable:$true] %s29
      %s31 = sshll.u32 [#allocation5], 4
      %s32 = int_to_ptr.vmem [resolvable:$true] %s31
      %34 = dma.hbm_to_vmem [thread:$0]  %s30, 16, %s32, [#allocation6]
    $region9: #{tpu_custom_call.1} parent=1 // pred_fallthru
      _
    // Predicated region
    $region10: #{tpu_custom_call.1} parent=1 // pred_check
      _
    $region11: #{tpu_custom_call.1} parent=1 // pred_check_branch
      %36 = sbr.rel (0) target = $region13
    $region12: #{tpu_custom_call.1} parent=1 // pred_region
      _
    $region13: #{tpu_custom_call.1} parent=1 // pred_fallthru
      _
    // Predicated region
    $region14: #{tpu_custom_call.1} parent=1 // pred_check
      _
    $region15: #{tpu_custom_call.1} parent=1 // pred_check_branch
      %38 = sbr.rel (0) target = $region17
    $region16: #{tpu_custom_call.1} parent=1 // pred_region
      %40 = dma.done [#allocation3], 1024
    $region17: #{tpu_custom_call.1} parent=1 // pred_fallthru
      _
    // Predicated region
    $region18: #{tpu_custom_call.1} parent=1 // pred_check
      _
    $region19: #{tpu_custom_call.1} parent=1 // pred_check_branch
      %42 = sbr.rel (0) target = $region21
    $region20: #{tpu_custom_call.1} parent=1 // pred_region
      %44 = dma.done [#allocation6], 16
    $region21: #{tpu_custom_call.1} parent=1 // pred_fallthru
      _
    %v45 = vld [vmem:[#allocation2] sm:$0xff]
    %v46 = vld [vmem:[#allocation2 + $0x8] sm:$0xff]
    %v47 = vld [vmem:[#allocation2 + $0x10] sm:$0xff]
    %v48 = vld [vmem:[#allocation2 + $0x18] sm:$0xff]
    %v49 = vld [vmem:[#allocation2 + $0x20] sm:$0xff]
    %v50 = vld [vmem:[#allocation2 + $0x28] sm:$0xff]
    %v51 = vld [vmem:[#allocation2 + $0x30] sm:$0xff]
    %v52 = vld [vmem:[#allocation2 + $0x38] sm:$0xff]
    %53 = vadd.xlane.f32.xlu0 %v45
    %v54 = vpop.xlane.xlu0 %53
    %55 = vadd.xlane.f32.xlu0 %v46
    %v56 = vpop.xlane.xlu0 %55
    %57 = vadd.xlane.f32.xlu0 %v47
    %v58 = vpop.xlane.xlu0 %57
    %59 = vadd.xlane.f32.xlu0 %v48
    %v60 = vpop.xlane.xlu0 %59
    %61 = vadd.xlane.f32.xlu0 %v49
    %v62 = vpop.xlane.xlu0 %61
    %63 = vadd.xlane.f32.xlu0 %v50
    %v64 = vpop.xlane.xlu0 %63
    %65 = vadd.xlane.f32.xlu0 %v51
    %v66 = vpop.xlane.xlu0 %65
    %67 = vadd.xlane.f32.xlu0 %v52
    %v68 = vpop.xlane.xlu0 %67
    %v69 = vmul.f32 %v54, 0.03125
    %v70 = vmul.f32 %v56, 0.03125
    %v71 = vmul.f32 %v58, 0.03125
    %v72 = vmul.f32 %v60, 0.03125
    %v73 = vmul.f32 %v62, 0.03125
    %v74 = vmul.f32 %v64, 0.03125
    %v75 = vmul.f32 %v66, 0.03125
    %v76 = vmul.f32 %v68, 0.03125
    %v77 = vlaneseq
    %v78 = vand.u32 %v77, 127
    %vm79 = vcmp.lt.s32.totalorder %v78, 32
    %v80 = vsub.f32 %v45, %v69
    %v81 = vsub.f32 %v46, %v70
    %v82 = vsub.f32 %v47, %v71
    %v83 = vsub.f32 %v48, %v72
    %v84 = vsub.f32 %v49, %v73
    %v85 = vsub.f32 %v50, %v74
    %v86 = vsub.f32 %v51, %v75
    %v87 = vsub.f32 %v52, %v76
    %v88 = vsel %vm79, %v80, 0.0
    %v89 = vsel %vm79, %v81, 0.0
    %v90 = vsel %vm79, %v82, 0.0
    %v91 = vsel %vm79, %v83, 0.0
    %v92 = vsel %vm79, %v84, 0.0
    %v93 = vsel %vm79, %v85, 0.0
    %v94 = vsel %vm79, %v86, 0.0
    %v95 = vsel %vm79, %v87, 0.0
    %v96 = vmul.f32 %v88, %v88
    %v97 = vmul.f32 %v89, %v89
    %v98 = vmul.f32 %v90, %v90
    %v99 = vmul.f32 %v91, %v91
    %v100 = vmul.f32 %v92, %v92
    %v101 = vmul.f32 %v93, %v93
    %v102 = vmul.f32 %v94, %v94
    %v103 = vmul.f32 %v95, %v95
    %104 = vadd.xlane.f32.xlu0 %v96
    %v105 = vpop.xlane.xlu0 %104
    %106 = vadd.xlane.f32.xlu0 %v97
    %v107 = vpop.xlane.xlu0 %106
    %108 = vadd.xlane.f32.xlu0 %v98
    %v109 = vpop.xlane.xlu0 %108
    %110 = vadd.xlane.f32.xlu0 %v99
    %v111 = vpop.xlane.xlu0 %110
    %112 = vadd.xlane.f32.xlu0 %v100
    %v113 = vpop.xlane.xlu0 %112
    %114 = vadd.xlane.f32.xlu0 %v101
    %v115 = vpop.xlane.xlu0 %114
    %116 = vadd.xlane.f32.xlu0 %v102
    %v117 = vpop.xlane.xlu0 %116
    %118 = vadd.xlane.f32.xlu0 %v103
    %v119 = vpop.xlane.xlu0 %118
    %v120 = vmul.f32 %v105, 0.03125
    %v121 = vmul.f32 %v107, 0.03125
    %v122 = vmul.f32 %v109, 0.03125
    %v123 = vmul.f32 %v111, 0.03125
    %v124 = vmul.f32 %v113, 0.03125
    %v125 = vmul.f32 %v115, 0.03125
    %v126 = vmul.f32 %v117, 0.03125
    %v127 = vmul.f32 %v119, 0.03125
    %v128 = vadd.f32 %v120, 1e-05
    %v129 = vadd.f32 %v121, 1e-05
    %v130 = vadd.f32 %v122, 1e-05
    %v131 = vadd.f32 %v123, 1e-05
    %v132 = vadd.f32 %v124, 1e-05
    %v133 = vadd.f32 %v125, 1e-05
    %v134 = vadd.f32 %v126, 1e-05
    %v135 = vadd.f32 %v127, 1e-05
    %v136 = vrsqrt.pop %v128
    %v137 = vmul.f32 %v136, %v128
    %v138 = vmul.f32 %v137, %v136
    %v139 = vmul.f32 0.5, %v138
    %v140 = vsub.f32 1.5, %v139
    %v141 = vmul.f32 %v136, %v140
    %vm142 = vweird.f32 %v128
    %vm143 = vweird.f32 %v136
    %vm144 = vmor %vm142, %vm143
    %v145 = vsel %vm144, %v136, %v141
    %v146 = vrsqrt.pop %v129
    %v147 = vmul.f32 %v146, %v129
    %v148 = vmul.f32 %v147, %v146
    %v149 = vmul.f32 0.5, %v148
    %v150 = vsub.f32 1.5, %v149
    %v151 = vmul.f32 %v146, %v150
    %vm152 = vweird.f32 %v129
    %vm153 = vweird.f32 %v146
    %vm154 = vmor %vm152, %vm153
    %v155 = vsel %vm154, %v146, %v151
    %v156 = vrsqrt.pop %v130
    %v157 = vmul.f32 %v156, %v130
    %v158 = vmul.f32 %v157, %v156
    %v159 = vmul.f32 0.5, %v158
    %v160 = vsub.f32 1.5, %v159
    %v161 = vmul.f32 %v156, %v160
    %vm162 = vweird.f32 %v130
    %vm163 = vweird.f32 %v156
    %vm164 = vmor %vm162, %vm163
    %v165 = vsel %vm164, %v156, %v161
    %v166 = vrsqrt.pop %v131
    %v167 = vmul.f32 %v166, %v131
    %v168 = vmul.f32 %v167, %v166
    %v169 = vmul.f32 0.5, %v168
    %v170 = vsub.f32 1.5, %v169
    %v171 = vmul.f32 %v166, %v170
    %vm172 = vweird.f32 %v131
    %vm173 = vweird.f32 %v166
    %vm174 = vmor %vm172, %vm173
    %v175 = vsel %vm174, %v166, %v171
    %v176 = vrsqrt.pop %v132
    %v177 = vmul.f32 %v176, %v132
    %v178 = vmul.f32 %v177, %v176
    %v179 = vmul.f32 0.5, %v178
    %v180 = vsub.f32 1.5, %v179
    %v181 = vmul.f32 %v176, %v180
    %vm182 = vweird.f32 %v132
    %vm183 = vweird.f32 %v176
    %vm184 = vmor %vm182, %vm183
    %v185 = vsel %vm184, %v176, %v181
    %v186 = vrsqrt.pop %v133
    %v187 = vmul.f32 %v186, %v133
    %v188 = vmul.f32 %v187, %v186
    %v189 = vmul.f32 0.5, %v188
    %v190 = vsub.f32 1.5, %v189
    %v191 = vmul.f32 %v186, %v190
    %vm192 = vweird.f32 %v133
    %vm193 = vweird.f32 %v186
    %vm194 = vmor %vm192, %vm193
    %v195 = vsel %vm194, %v186, %v191
    %v196 = vrsqrt.pop %v134
    %v197 = vmul.f32 %v196, %v134
    %v198 = vmul.f32 %v197, %v196
    %v199 = vmul.f32 0.5, %v198
    %v200 = vsub.f32 1.5, %v199
    %v201 = vmul.f32 %v196, %v200
    %vm202 = vweird.f32 %v134
    %vm203 = vweird.f32 %v196
    %vm204 = vmor %vm202, %vm203
    %v205 = vsel %vm204, %v196, %v201
    %v206 = vrsqrt.pop %v135
    %v207 = vmul.f32 %v206, %v135
    %v208 = vmul.f32 %v207, %v206
    %v209 = vmul.f32 0.5, %v208
    %v210 = vsub.f32 1.5, %v209
    %v211 = vmul.f32 %v206, %v210
    %vm212 = vweird.f32 %v135
    %vm213 = vweird.f32 %v206
    %vm214 = vmor %vm212, %vm213
    %v215 = vsel %vm214, %v206, %v211
    %v216 = vmul.f32 %v88, %v145
    %v217 = vmul.f32 %v89, %v155
    %v218 = vmul.f32 %v90, %v165
    %v219 = vmul.f32 %v91, %v175
    %v220 = vmul.f32 %v92, %v185
    %v221 = vmul.f32 %v93, %v195
    %v222 = vmul.f32 %v94, %v205
    %v223 = vmul.f32 %v95, %v215
    %v224 = vld [vmem:[#allocation5] sm:$0x1]
    %v226 = vperm.slane %v224, 0
    %v228 = vmul.f32 %v216, %v226
    %v229 = vmul.f32 %v217, %v226
    %v230 = vmul.f32 %v218, %v226
    %v231 = vmul.f32 %v219, %v226
    %v232 = vmul.f32 %v220, %v226
    %v233 = vmul.f32 %v221, %v226
    %v234 = vmul.f32 %v222, %v226
    %v235 = vmul.f32 %v223, %v226
    %v236 = vld [vmem:[%s2] sm:$0x1]
    %v238 = vperm.slane %v236, 0
    %v240 = vadd.f32 %v228, %v238
    %v241 = vadd.f32 %v229, %v238
    %v242 = vadd.f32 %v230, %v238
    %v243 = vadd.f32 %v231, %v238
    %v244 = vadd.f32 %v232, %v238
    %v245 = vadd.f32 %v233, %v238
    %v246 = vadd.f32 %v234, %v238
    %v247 = vadd.f32 %v235, %v238
    %v248 = vmax.f32 %v240, 0.0
    %v249 = vmax.f32 %v241, 0.0
    %v250 = vmax.f32 %v242, 0.0
    %v251 = vmax.f32 %v243, 0.0
    %v252 = vmax.f32 %v244, 0.0
    %v253 = vmax.f32 %v245, 0.0
    %v254 = vmax.f32 %v246, 0.0
    %v255 = vmax.f32 %v247, 0.0
    %v256 = vpack.c.bf16 %v248, %v248
    %v257 = vpack.c.bf16 %v249, %v249
    %v258 = vpack.c.bf16 %v250, %v250
    %v259 = vpack.c.bf16 %v251, %v251
    %v260 = vpack.c.bf16 %v252, %v252
    %v261 = vpack.c.bf16 %v253, %v253
    %v262 = vpack.c.bf16 %v254, %v254
    %v263 = vpack.c.bf16 %v255, %v255
    %264 = vst [vmem:[#allocation7] sm:$0xf] %v256
    %265 = vst [vmem:[#allocation7 + $0x4] sm:$0xf] %v257
    %266 = vst [vmem:[#allocation7 + $0x8] sm:$0xf] %v258
    %267 = vst [vmem:[#allocation7 + $0xc] sm:$0xf] %v259
    %268 = vst [vmem:[#allocation7 + $0x10] sm:$0xf] %v260
    %269 = vst [vmem:[#allocation7 + $0x14] sm:$0xf] %v261
    %270 = vst [vmem:[#allocation7 + $0x18] sm:$0xf] %v262
    %271 = vst [vmem:[#allocation7 + $0x1c] sm:$0xf] %v263
    // Predicated region
    $region22: #{tpu_custom_call.1} parent=1 // pred_check
      _
    $region23: #{tpu_custom_call.1} parent=1 // pred_check_branch
      %273 = sbr.rel (0) target = $region25
    $region24: #{tpu_custom_call.1} parent=1 // pred_region
      %275 = vsyncadd [#allocation4], 0
      %s276 = sshll.u32 [#allocation7], 4
      %s277 = int_to_ptr.vmem [resolvable:$true] %s276
      %s278 = sshll.u32 %s3, 4
      %s279 = int_to_ptr.hbm [resolvable:$true] %s278
      %284 = dma.vmem_to_hbm [thread:$0]  %s277, 512, %s279, [#allocation4], 64, 64, 4
    $region25: #{tpu_custom_call.1} parent=1 // pred_fallthru
      _
    // Predicated region
    $region26: #{tpu_custom_call.1} parent=1 // pred_check
      _
    $region27: #{tpu_custom_call.1} parent=1 // pred_check_branch
      %286 = sbr.rel (0) target = $region29
    $region28: #{tpu_custom_call.1} parent=1 // pred_region
      %288 = dma.done [#allocation4], 512
    $region29: #{tpu_custom_call.1} parent=1 // pred_fallthru
      _
    %289 = vsyncpa [#allocation3], 1
    %290 = vsyncpa [#allocation6], 1
    %291 = vsyncpa [#allocation4], 1

</llo_original>
